<compile_context>
chip_gen: v6e
topology: v6e:2x2x1
jax: 0.10.0
libtpu: 0.0.40
codegen_flags: <defaults>
</compile_context>

<pallas_src>
import functools

import jax
import jax.numpy as jnp
from jax.experimental import pallas as pl
from jax.experimental.pallas import tpu as pltpu

LANE_PAD = 128  # pad all feature dims to one lane-dense vreg width


def _round_up(n, m):
    return ((n + m - 1) // m) * m


def _mlp_kernel(x_ref, w_ref, b_ref, alpha_ref, o_ref, *, compute_dtype):
    # PReLU alphas: scalar reads straight from SMEM (no vector load / broadcast DMA).
    a1 = alpha_ref[0]
    a2 = alpha_ref[1]

    x = x_ref[...].astype(compute_dtype)
    w1 = w_ref[0].astype(compute_dtype)
    w2 = w_ref[1].astype(compute_dtype)
    w3 = w_ref[2].astype(compute_dtype)

    # Layer 1: Linear + PReLU  (f32 accumulation on the MXU)
    h1 = jnp.dot(x, w1, preferred_element_type=jnp.float32) + b_ref[0:1, :]
    h1 = jnp.where(h1 >= 0, h1, a1 * h1)

    # Layer 2: Linear + PReLU
    h2 = jnp.dot(h1.astype(compute_dtype), w2,
                 preferred_element_type=jnp.float32) + b_ref[1:2, :]
    h2 = jnp.where(h2 >= 0, h2, a2 * h2)

    # Layer 3: Linear (output head), lane-dense store
    out = jnp.dot(h2.astype(compute_dtype), w3,
                  preferred_element_type=jnp.float32) + b_ref[2:3, :]
    o_ref[...] = out.astype(o_ref.dtype)


def pack_params(params, pad=LANE_PAD):
    """Pack the 3 (transposed) weight matrices, 3 biases and 2 PReLU alphas into
    one weight slab, one bias slab and one scalar vector (done once, outside the
    kernel call)."""
    w1, b1, a1 = params["w1"], params["b1"], params["a1"]
    w2, b2, a2 = params["w2"], params["b2"], params["a2"]
    w3, b3 = params["w3"], params["b3"]

    n_in, h1 = w1.shape
    _, h2 = w2.shape
    _, n_out = w3.shape

    W = jnp.zeros((3, pad, pad), jnp.float32)
    W = W.at[0, :n_in, :h1].set(w1)
    W = W.at[1, :h1, :h2].set(w2)
    W = W.at[2, :h2, :n_out].set(w3)

    Bb = jnp.zeros((3, pad), jnp.float32)
    Bb = Bb.at[0, :h1].set(b1.reshape(-1))
    Bb = Bb.at[1, :h2].set(b2.reshape(-1))
    Bb = Bb.at[2, :n_out].set(b3.reshape(-1))

    alphas = jnp.concatenate([a1.reshape(-1), a2.reshape(-1)]).astype(jnp.float32)

    return dict(W=W, b=Bb, alphas=alphas, n_in=n_in, n_out=n_out)


def mymodel_forward(x, packed, *, block_rows=512, compute_dtype=jnp.float32):
    """Fused 3-layer MLP forward pass in a single Pallas kernel.

    x: (B, n_input) f32
    packed: output of pack_params()
    """
    W, Bb, alphas = packed["W"], packed["b"], packed["alphas"]
    n_in, n_out = packed["n_in"], packed["n_out"]
    pad = W.shape[-1]

    B = x.shape[0]
    TB = min(block_rows, _round_up(B, 8))   # batch tile (sublane-aligned)
    B_pad = _round_up(B, TB)
    nb = B_pad // TB

    # Zero-pad batch rows and feature lanes (exact: padded contributions are 0).
    x_pad = jnp.zeros((B_pad, pad), jnp.float32).at[:B, :n_in].set(x)

    kernel = functools.partial(_mlp_kernel, compute_dtype=compute_dtype)

    out = pl.pallas_call(
        kernel,
        out_shape=jax.ShapeDtypeStruct((B_pad, pad), jnp.float32),
        grid_spec=pltpu.PrefetchScalarGridSpec(
            num_scalar_prefetch=0,
            grid=(nb,),
            in_specs=[
                # activations: tiled over the batch grid
                pl.BlockSpec((TB, pad), lambda i: (i, 0)),
                # packed weights: constant index map -> VMEM-resident across steps
                pl.BlockSpec((3, pad, pad), lambda i: (0, 0, 0)),
                # packed biases: constant index map -> VMEM-resident
                pl.BlockSpec((3, pad), lambda i: (0, 0)),
                # PReLU alphas: scalars in SMEM
                pl.BlockSpec(memory_space=pltpu.MemorySpace.SMEM),
            ],
            out_specs=pl.BlockSpec((TB, pad), lambda i: (i, 0)),
        ),
        compiler_params=pltpu.CompilerParams(
            dimension_semantics=("parallel",)),
    )(x_pad, W, Bb, alphas)

    return out[:B, :n_out]


def init_params(key, n_input, n_output, n_hidden=(20, 20)):
    """Deterministic synthetic parameters matching PyTorch layer shapes
    (nn.Linear weight is (out,in); we store the transpose (in,out))."""
    k = jax.random.split(key, 6)
    h1, h2 = n_hidden

    def linear(kw, kb, fan_in, fan_out):
        bound = 1.0 / jnp.sqrt(fan_in)
        w = jax.random.uniform(kw, (fan_in, fan_out), jnp.float32, -bound, bound)
        b = jax.random.uniform(kb, (1, fan_out), jnp.float32, -bound, bound)
        return w, b

    w1, b1 = linear(k[0], k[1], n_input, h1)
    w2, b2 = linear(k[2], k[3], h1, h2)
    w3, b3 = linear(k[4], k[5], h2, n_output)

    # PyTorch PReLU default init: alpha = 0.25 (single shared parameter)
    a1 = jnp.full((1, 1), 0.25, jnp.float32)
    a2 = jnp.full((1, 1), 0.25, jnp.float32)

    return dict(w1=w1, b1=b1, a1=a1, w2=w2, b2=b2, a2=a2, w3=w3, b3=b3)


def reference_forward(x, p):
    h1 = x @ p["w1"] + p["b1"]
    h1 = jnp.where(h1 >= 0, h1, p["a1"][0, 0] * h1)
    h2 = h1 @ p["w2"] + p["b2"]
    h2 = jnp.where(h2 >= 0, h2, p["a2"][0, 0] * h2)
    return h2 @ p["w3"] + p["b3"]


if __name__ == "__main__":
    key = jax.random.PRNGKey(0)
    kx, kp, kx2 = jax.random.split(key, 3)

    # Titanic-style tabular input: batch=8, n_input=11 features, n_output=2 classes
    B, n_input, n_output = 8, 11, 2
    x = jax.random.normal(kx, (B, n_input), jnp.float32)
    params = init_params(kp, n_input, n_output)
    packed = pack_params(params)

    # Single-block path (B=8)
    out = mymodel_forward(x, packed)
    jax.block_until_ready(out)
    ref = reference_forward(x, params)
    assert out.shape == (B, n_output)
    assert jnp.allclose(out, ref, atol=1e-4, rtol=1e-4)

    # Multi-block batch-grid path (exercises constant weight index_maps + padding)
    B2 = 200
    x2 = jax.random.normal(kx2, (B2, n_input), jnp.float32)
    out2 = mymodel_forward(x2, packed, block_rows=64)
    jax.block_until_ready(out2)
    ref2 = reference_forward(x2, params)
    assert out2.shape == (B2, n_output)
    assert jnp.allclose(out2, ref2, atol=1e-4, rtol=1e-4)

    print("KERNEL_OK")
</pallas_src>

<mosaic_0001>
module attributes {stable_mosaic.version = 11 : i64} {
  func.func @_mlp_kernel(%arg0: i32, %arg1: memref<8x128xf32, #tpu.memory_space<vmem>>, %arg2: memref<3x128x128xf32, #tpu.memory_space<vmem>>, %arg3: memref<3x128xf32, #tpu.memory_space<vmem>>, %arg4: memref<2xf32, #tpu.memory_space<smem>>, %arg5: memref<8x128xf32, #tpu.memory_space<vmem>>) attributes {dimension_semantics = [#tpu.dimension_semantics<parallel>], iteration_bounds = array<i64: 1>, scalar_prefetch = 0 : i64, scratch_operands = 0 : i64, tpu.core_type = #tpu.core_type<tc>, window_params = [{transform_indices = @transform_0, window_bounds = array<i64: 8, 128>}, {pipeline_mode = #tpu.pipeline_mode<synchronous>, transform_indices = @transform_1, window_bounds = array<i64: 3, 128, 128>}, {pipeline_mode = #tpu.pipeline_mode<synchronous>, transform_indices = @transform_2, window_bounds = array<i64: 3, 128>}, {transform_indices = @transform_3, window_bounds = array<i64: 2>}, {transform_indices = @transform_4, window_bounds = array<i64: 8, 128>}]} {
    %c0 = arith.constant 0 : index
    %0 = memref.load %arg4[%c0] : memref<2xf32, #tpu.memory_space<smem>>
    %c1 = arith.constant 1 : index
    %1 = memref.load %arg4[%c1] : memref<2xf32, #tpu.memory_space<smem>>
    %c0_0 = arith.constant 0 : index
    %c0_1 = arith.constant 0 : index
    %2 = vector.load %arg1[%c0_0, %c0_1] : memref<8x128xf32, #tpu.memory_space<vmem>>, vector<8x128xf32>
    %c0_2 = arith.constant 0 : index
    %c0_3 = arith.constant 0 : index
    %c0_4 = arith.constant 0 : index
    %3 = vector.load %arg2[%c0_2, %c0_3, %c0_4] : memref<3x128x128xf32, #tpu.memory_space<vmem>>, vector<1x128x128xf32>
    %4 = vector.shape_cast %3 : vector<1x128x128xf32> to vector<128x128xf32>
    %c1_5 = arith.constant 1 : index
    %c0_6 = arith.constant 0 : index
    %c0_7 = arith.constant 0 : index
    %5 = vector.load %arg2[%c1_5, %c0_6, %c0_7] : memref<3x128x128xf32, #tpu.memory_space<vmem>>, vector<1x128x128xf32>
    %6 = vector.shape_cast %5 : vector<1x128x128xf32> to vector<128x128xf32>
    %c2 = arith.constant 2 : index
    %c0_8 = arith.constant 0 : index
    %c0_9 = arith.constant 0 : index
    %7 = vector.load %arg2[%c2, %c0_8, %c0_9] : memref<3x128x128xf32, #tpu.memory_space<vmem>>, vector<1x128x128xf32>
    %8 = vector.shape_cast %7 : vector<1x128x128xf32> to vector<128x128xf32>
    %cst = arith.constant dense<0.000000e+00> : vector<8x128xf32>
    %9 = tpu.matmul %2, %4, %cst {dimension_numbers = #tpu.dot_dimension_numbers<[1], [0], [0], [1], [0, 0, 1, 1], [], []>} : vector<8x128xf32>, vector<128x128xf32>, vector<8x128xf32> -> vector<8x128xf32>
    %c0_10 = arith.constant 0 : index
    %c0_11 = arith.constant 0 : index
    %10 = vector.load %arg3[%c0_10, %c0_11] : memref<3x128xf32, #tpu.memory_space<vmem>>, vector<1x128xf32>
    %11 = vector.broadcast %10 : vector<1x128xf32> to vector<8x128xf32>
    %12 = arith.addf %9, %11 : vector<8x128xf32>
    %cst_12 = arith.constant 0.000000e+00 : f32
    %13 = vector.broadcast %cst_12 : f32 to vector<8x128xf32>
    %14 = arith.cmpf oge, %12, %13 : vector<8x128xf32>
    %15 = vector.broadcast %0 : f32 to vector<8x128xf32>
    %16 = arith.mulf %15, %12 : vector<8x128xf32>
    %17 = arith.select %14, %12, %16 : vector<8x128xi1>, vector<8x128xf32>
    %cst_13 = arith.constant dense<0.000000e+00> : vector<8x128xf32>
    %18 = tpu.matmul %17, %6, %cst_13 {dimension_numbers = #tpu.dot_dimension_numbers<[1], [0], [0], [1], [0, 0, 1, 1], [], []>} : vector<8x128xf32>, vector<128x128xf32>, vector<8x128xf32> -> vector<8x128xf32>
    %c1_14 = arith.constant 1 : index
    %c0_15 = arith.constant 0 : index
    %19 = vector.load %arg3[%c1_14, %c0_15] : memref<3x128xf32, #tpu.memory_space<vmem>>, vector<1x128xf32>
    %20 = vector.broadcast %19 : vector<1x128xf32> to vector<8x128xf32>
    %21 = arith.addf %18, %20 : vector<8x128xf32>
    %cst_16 = arith.constant 0.000000e+00 : f32
    %22 = vector.broadcast %cst_16 : f32 to vector<8x128xf32>
    %23 = arith.cmpf oge, %21, %22 : vector<8x128xf32>
    %24 = vector.broadcast %1 : f32 to vector<8x128xf32>
    %25 = arith.mulf %24, %21 : vector<8x128xf32>
    %26 = arith.select %23, %21, %25 : vector<8x128xi1>, vector<8x128xf32>
    %cst_17 = arith.constant dense<0.000000e+00> : vector<8x128xf32>
    %27 = tpu.matmul %26, %8, %cst_17 {dimension_numbers = #tpu.dot_dimension_numbers<[1], [0], [0], [1], [0, 0, 1, 1], [], []>} : vector<8x128xf32>, vector<128x128xf32>, vector<8x128xf32> -> vector<8x128xf32>
    %c2_18 = arith.constant 2 : index
    %c0_19 = arith.constant 0 : index
    %28 = vector.load %arg3[%c2_18, %c0_19] : memref<3x128xf32, #tpu.memory_space<vmem>>, vector<1x128xf32>
    %29 = vector.broadcast %28 : vector<1x128xf32> to vector<8x128xf32>
    %30 = arith.addf %27, %29 : vector<8x128xf32>
    %c0_20 = arith.constant 0 : index
    %c0_21 = arith.constant 0 : index
    %31 = vector.load %arg5[%c0_20, %c0_21] : memref<8x128xf32, #tpu.memory_space<vmem>>, vector<8x128xf32>
    tpu.vector_store %arg5[%c0_20, %c0_21], %30 {strides = array<i32>} : memref<8x128xf32, #tpu.memory_space<vmem>>, vector<8x128xf32>,
    return
  }
  func.func @transform_0(%arg0: i32) -> (i32, i32) {
    %c0_i32 = arith.constant 0 : i32
    %c0_i32_0 = arith.constant 0 : i32
    return %arg0, %c0_i32 : i32, i32
  }
  func.func @transform_1(%arg0: i32) -> (i32, i32, i32) {
    %c0_i32 = arith.constant 0 : i32
    %c0_i32_0 = arith.constant 0 : i32
    %c0_i32_1 = arith.constant 0 : i32
    %c0_i32_2 = arith.constant 0 : i32
    return %c0_i32, %c0_i32_0, %c0_i32_1 : i32, i32, i32
  }
  func.func @transform_2(%arg0: i32) -> (i32, i32) {
    %c0_i32 = arith.constant 0 : i32
    %c0_i32_0 = arith.constant 0 : i32
    %c0_i32_1 = arith.constant 0 : i32
    return %c0_i32, %c0_i32_0 : i32, i32
  }
  func.func @transform_3(%arg0: i32) -> i32 {
    %c0_i32 = arith.constant 0 : i32
    %c0_i32_0 = arith.constant 0 : i32
    return %c0_i32 : i32
  }
  func.func @transform_4(%arg0: i32) -> (i32, i32) {
    %c0_i32 = arith.constant 0 : i32
    %c0_i32_0 = arith.constant 0 : i32
    return %arg0, %c0_i32 : i32, i32
  }
}

</mosaic_0001>

<llo_original>
// kernel: tpu_custom_call.1
$region0: #{tpu_custom_call.1}
  #allocation0 [shape = 'u32[]', space=smem, size = 0x4, offset = 0x4, fixed_abs, tag = 'smem constant byte address 0x4 - core index']
  #allocation1 [shape = 'u32[144,128]{1,0:T(1,128)}', space=vmem, size = 0x12000, scoped, tag = 'internal scratch']
  %s0 = inlined_call_operand.hbm [shape: f32[8,128], index: 0, kind: input, shape index: {}]
  %s1 = inlined_call_operand.hbm [shape: f32[3,128,128], index: 1, kind: input, shape index: {}]
  %s2 = inlined_call_operand.hbm [shape: f32[3,128], index: 2, kind: input, shape index: {}]
  %s3 = inlined_call_operand.vmem [shape: f32[2], index: 3, kind: input, shape index: {}]
  %s4 = inlined_call_operand.hbm [shape: f32[8,128], index: 4, kind: output, shape index: {}]
  %s5 = sld [smem:[#allocation0]]
  $region42: #{tpu_custom_call.1} parent=0
    _
  %s7 = ssub.s32 1, %s5
  %s8 = scalar_select 0, %s7, %s5
  $region1: #{tpu_custom_call.1} parent=0
    #allocation2 [shape = 'u8[4096]{0}', space=vmem, size = 0x1000, scoped, tag = 'input window, operand 0, single buffered']
    #allocation3 [shape = 's32[1]{0}', space=sflag, size = 0x4, scoped, tag = 'scoped memory for tpu_custom_call.1']
    #allocation4 [shape = 's32[1]{0}', space=sflag, size = 0x4, scoped, tag = 'scoped memory for tpu_custom_call.1']
    #allocation5 [shape = 's32[1]{0}', space=sflag, size = 0x4, scoped, tag = 'scoped memory for tpu_custom_call.1']
    #allocation6 [shape = 'u8[196608]{0}', space=vmem, size = 0x30000, scoped, tag = 'input window, operand 1, single buffered']
    #allocation7 [shape = 's32[1]{0}', space=sflag, size = 0x4, scoped, tag = 'scoped memory for tpu_custom_call.1']
    #allocation8 [shape = 'u8[2048]{0}', space=vmem, size = 0x800, scoped, tag = 'input window, operand 2, single buffered']
    #allocation9 [shape = 'u8[512]{0}', space=smem, size = 0x200, scoped, tag = 'input window, operand 3, single buffered']
    #allocation10 [shape = 'u8[4096]{0}', space=vmem, size = 0x1000, scoped, tag = 'output window, operand 0, single buffered']
    %9 = vsyncpa [#allocation3], 0
    %10 = vsyncpa [#allocation7], 0
    %11 = vsyncpa [#allocation5], 0
    %12 = vsyncpa [#allocation4], 0
    // Predicated region
    $region2: #{tpu_custom_call.1} parent=1 // pred_check
      _
    $region3: #{tpu_custom_call.1} parent=1 // pred_check_branch
      %14 = sbr.rel (0) target = $region5
    $region4: #{tpu_custom_call.1} parent=1 // pred_region
      %s16 = ssub.s32 128, 128
      %17 = vsyncadd [#allocation3], %s16
      %s19 = sshll.u32 [#allocation2], 4
      %s20 = int_to_ptr.vmem [resolvable:$true] %s19
      %22 = dma.hbm_to_vmem [thread:$0]  %s0, 128, %s20, [#allocation3]
    $region5: #{tpu_custom_call.1} parent=1 // pred_fallthru
      _
    // Predicated region
    $region6: #{tpu_custom_call.1} parent=1 // pred_check
      _
    $region7: #{tpu_custom_call.1} parent=1 // pred_check_branch
      %24 = sbr.rel (0) target = $region9
    $region8: #{tpu_custom_call.1} parent=1 // pred_region
      %s26 = ssub.s32 6144, 6144
      %27 = vsyncadd [#allocation7], %s26
      %s28 = sshll.u32 [#allocation6], 4
      %s29 = int_to_ptr.vmem [resolvable:$true] %s28
      %34 = dma.hbm_to_vmem [thread:$0]  %s1, 6144, %s29, [#allocation7], 128, 128, 8
    $region9: #{tpu_custom_call.1} parent=1 // pred_fallthru
      _
    // Predicated region
    $region10: #{tpu_custom_call.1} parent=1 // pred_check
      _
    $region11: #{tpu_custom_call.1} parent=1 // pred_check_branch
      %36 = sbr.rel (0) target = $region13
    $region12: #{tpu_custom_call.1} parent=1 // pred_region
      %s38 = ssub.s32 64, 64
      %39 = vsyncadd [#allocation7], %s38
      %s41 = sshll.u32 [#allocation8], 4
      %s42 = int_to_ptr.vmem [resolvable:$true] %s41
      %44 = dma.hbm_to_vmem [thread:$0]  %s2, 64, %s42, [#allocation7]
    $region13: #{tpu_custom_call.1} parent=1 // pred_fallthru
      _
    // Predicated region
    $region14: #{tpu_custom_call.1} parent=1 // pred_check
      _
    $region15: #{tpu_custom_call.1} parent=1 // pred_check_branch
      %46 = sbr.rel (0) target = $region17
    $region16: #{tpu_custom_call.1} parent=1 // pred_region
      %s48 = ssub.s32 16, 16
      %49 = vsyncadd [#allocation5], %s48
      %s51 = sshll.u32 %s3, 4
      %s52 = int_to_ptr.vmem [resolvable:$true] %s51
      %54 = dma.vmem_to_smem %s52, 16, [#allocation9], [#allocation5]
    $region17: #{tpu_custom_call.1} parent=1 // pred_fallthru
      _
    // Predicated region
    $region18: #{tpu_custom_call.1} parent=1 // pred_check
      _
    $region19: #{tpu_custom_call.1} parent=1 // pred_check_branch
      %56 = sbr.rel (0) target = $region21
    $region20: #{tpu_custom_call.1} parent=1 // pred_region
      %57 = dma.done [#allocation3], 128
    $region21: #{tpu_custom_call.1} parent=1 // pred_fallthru
      _
    // Predicated region
    $region22: #{tpu_custom_call.1} parent=1 // pred_check
      _
    $region23: #{tpu_custom_call.1} parent=1 // pred_check_branch
      %59 = sbr.rel (0) target = $region25
    $region24: #{tpu_custom_call.1} parent=1 // pred_region
      %60 = dma.done [#allocation7], 6144
    $region25: #{tpu_custom_call.1} parent=1 // pred_fallthru
      _
    // Predicated region
    $region26: #{tpu_custom_call.1} parent=1 // pred_check
      _
    $region27: #{tpu_custom_call.1} parent=1 // pred_check_branch
      %62 = sbr.rel (0) target = $region29
    $region28: #{tpu_custom_call.1} parent=1 // pred_region
      %63 = dma.done [#allocation7], 64
    $region29: #{tpu_custom_call.1} parent=1 // pred_fallthru
      _
    // Predicated region
    $region30: #{tpu_custom_call.1} parent=1 // pred_check
      _
    $region31: #{tpu_custom_call.1} parent=1 // pred_check_branch
      %65 = sbr.rel (0) target = $region33
    $region32: #{tpu_custom_call.1} parent=1 // pred_region
      %66 = dma.done [#allocation5], 16
    $region33: #{tpu_custom_call.1} parent=1 // pred_fallthru
      _
    %67 = sfence
    %s68 = sld [smem:[#allocation9]]
    %s69 = sld [smem:[#allocation9 + $0x1]]
    %v70 = vld [vmem:[#allocation2] sm:$0xff]
    %v71 = vld [vmem:[#allocation6] sm:$0xff]
    %v72 = vld [vmem:[#allocation6 + $0x8] sm:$0xff]
    %v73 = vld [vmem:[#allocation6 + $0x10] sm:$0xff]
    %v74 = vld [vmem:[#allocation6 + $0x18] sm:$0xff]
    %v75 = vld [vmem:[#allocation6 + $0x20] sm:$0xff]
    %v76 = vld [vmem:[#allocation6 + $0x28] sm:$0xff]
    %v77 = vld [vmem:[#allocation6 + $0x30] sm:$0xff]
    %v78 = vld [vmem:[#allocation6 + $0x38] sm:$0xff]
    %v79 = vld [vmem:[#allocation6 + $0x40] sm:$0xff]
    %v80 = vld [vmem:[#allocation6 + $0x48] sm:$0xff]
    %v81 = vld [vmem:[#allocation6 + $0x50] sm:$0xff]
    %v82 = vld [vmem:[#allocation6 + $0x58] sm:$0xff]
    %v83 = vld [vmem:[#allocation6 + $0x60] sm:$0xff]
    %v84 = vld [vmem:[#allocation6 + $0x68] sm:$0xff]
    %v85 = vld [vmem:[#allocation6 + $0x70] sm:$0xff]
    %v86 = vld [vmem:[#allocation6 + $0x78] sm:$0xff]
    %s87 = scalar_lea.vmem [#allocation6], 128
    %v88 = vld [vmem:[%s87] sm:$0xff]
    %v89 = vld [vmem:[%s87 + $0x8] sm:$0xff]
    %v90 = vld [vmem:[%s87 + $0x10] sm:$0xff]
    %v91 = vld [vmem:[%s87 + $0x18] sm:$0xff]
    %v92 = vld [vmem:[%s87 + $0x20] sm:$0xff]
    %v93 = vld [vmem:[%s87 + $0x28] sm:$0xff]
    %v94 = vld [vmem:[%s87 + $0x30] sm:$0xff]
    %v95 = vld [vmem:[%s87 + $0x38] sm:$0xff]
    %v96 = vld [vmem:[%s87 + $0x40] sm:$0xff]
    %v97 = vld [vmem:[%s87 + $0x48] sm:$0xff]
    %v98 = vld [vmem:[%s87 + $0x50] sm:$0xff]
    %v99 = vld [vmem:[%s87 + $0x58] sm:$0xff]
    %v100 = vld [vmem:[%s87 + $0x60] sm:$0xff]
    %v101 = vld [vmem:[%s87 + $0x68] sm:$0xff]
    %v102 = vld [vmem:[%s87 + $0x70] sm:$0xff]
    %v103 = vld [vmem:[%s87 + $0x78] sm:$0xff]
    %s104 = scalar_lea.vmem [#allocation6], 256
    %v105 = vld [vmem:[%s104] sm:$0xff]
    %v106 = vld [vmem:[%s104 + $0x8] sm:$0xff]
    %v107 = vld [vmem:[%s104 + $0x10] sm:$0xff]
    %v108 = vld [vmem:[%s104 + $0x18] sm:$0xff]
    %v109 = vld [vmem:[%s104 + $0x20] sm:$0xff]
    %v110 = vld [vmem:[%s104 + $0x28] sm:$0xff]
    %v111 = vld [vmem:[%s104 + $0x30] sm:$0xff]
    %v112 = vld [vmem:[%s104 + $0x38] sm:$0xff]
    %v113 = vld [vmem:[%s104 + $0x40] sm:$0xff]
    %v114 = vld [vmem:[%s104 + $0x48] sm:$0xff]
    %v115 = vld [vmem:[%s104 + $0x50] sm:$0xff]
    %v116 = vld [vmem:[%s104 + $0x58] sm:$0xff]
    %v117 = vld [vmem:[%s104 + $0x60] sm:$0xff]
    %v118 = vld [vmem:[%s104 + $0x68] sm:$0xff]
    %v119 = vld [vmem:[%s104 + $0x70] sm:$0xff]
    %v120 = vld [vmem:[%s104 + $0x78] sm:$0xff]
    %v121 = vld [vmem:[#allocation8] sm:$0x1]
    %v122 = vlaneseq
    %v123 = vshrl.u32 %v122, 7
    %v124 = vsub.s32 0, %v123
    %v125 = vrot.slane %v121, %v124
    %126 = vmatprep.subr.mxu0 0.0
    %127 = vmatpush1.msra.mxu0 %v86
    %128 = vmatprep.subr.mxu0 0.0
    %129 = vmatpush1.msra.mxu0 %v85
    %130 = vmatprep.subr.mxu0 0.0
    %131 = vmatpush1.msra.mxu0 %v84
    %132 = vmatprep.subr.mxu0 0.0
    %133 = vmatpush1.msra.mxu0 %v83
    %134 = vmatprep.subr.mxu0 0.0
    %135 = vmatpush1.msra.mxu0 %v82
    %136 = vmatprep.subr.mxu0 0.0
    %137 = vmatpush1.msra.mxu0 %v81
    %138 = vmatprep.subr.mxu0 0.0
    %139 = vmatpush1.msra.mxu0 %v80
    %140 = vmatprep.subr.mxu0 0.0
    %141 = vmatpush1.msra.mxu0 %v79
    %142 = vmatprep.subr.mxu0 0.0
    %143 = vmatpush1.msra.mxu0 %v78
    %144 = vmatprep.subr.mxu0 0.0
    %145 = vmatpush1.msra.mxu0 %v77
    %146 = vmatprep.subr.mxu0 0.0
    %147 = vmatpush1.msra.mxu0 %v76
    %148 = vmatprep.subr.mxu0 0.0
    %149 = vmatpush1.msra.mxu0 %v75
    %150 = vmatprep.subr.mxu0 0.0
    %151 = vmatpush1.msra.mxu0 %v74
    %152 = vmatprep.subr.mxu0 0.0
    %153 = vmatpush1.msra.mxu0 %v73
    %154 = vmatprep.subr.mxu0 0.0
    %155 = vmatpush1.msra.mxu0 %v72
    %156 = vmatprep.subr.mxu0 0.0
    %157 = vmatpush1.msra.mxu0 %v71
    %158 = vmatprep.subr.mxu0 0.0
    %159 = vmatpush2.msra.mxu0 0.0
    %160 = vmatprep.subr.mxu0 0.0
    %161 = vmatpush2.msra.mxu0 0.0
    %162 = vmatprep.subr.mxu0 0.0
    %163 = vmatpush2.msra.mxu0 0.0
    %164 = vmatprep.subr.mxu0 0.0
    %165 = vmatpush2.msra.mxu0 0.0
    %166 = vmatprep.subr.mxu0 0.0
    %167 = vmatpush2.msra.mxu0 0.0
    %168 = vmatprep.subr.mxu0 0.0
    %169 = vmatpush2.msra.mxu0 0.0
    %170 = vmatprep.subr.mxu0 0.0
    %171 = vmatpush2.msra.mxu0 0.0
    %172 = vmatprep.subr.mxu0 0.0
    %173 = vmatpush2.msra.mxu0 0.0
    %174 = vmatprep.subr.mxu0 0.0
    %175 = vmatpush2.msra.mxu0 0.0
    %176 = vmatprep.subr.mxu0 0.0
    %177 = vmatpush2.msra.mxu0 0.0
    %178 = vmatprep.subr.mxu0 0.0
    %179 = vmatpush2.msra.mxu0 0.0
    %180 = vmatprep.subr.mxu0 0.0
    %181 = vmatpush2.msra.mxu0 0.0
    %182 = vmatprep.subr.mxu0 0.0
    %183 = vmatpush2.msra.mxu0 0.0
    %184 = vmatprep.subr.mxu0 0.0
    %185 = vmatpush2.msra.mxu0 0.0
    %186 = vmatprep.subr.mxu0 0.0
    %187 = vmatpush2.msra.mxu0 0.0
    %188 = vmatprep.subr.mxu0 0.0
    %189 = vmatpush2.msra.mxu0 0.0
    %190 = vmatprep.mubr.f32.mxu0 0.0
    %191 = vmatmul.mubr.f32.gmra.mxu0 %v70
    %v192 = vpop.f32.mrf.mxu0
    %v193 = vadd.f32 %v125, %v192
    %v194 = vpop.f32.mrf.mxu0
    %195 = vdwg.mxu0
    %vm196 = vcmp.ge.f32.partialorder %v193, 0.0
    %v197 = vstv %s68
    %v198 = vmul.f32 %v197, %v193
    %v199 = vsel %vm196, %v193, %v198
    %v200 = vld [vmem:[#allocation8 + $0x1] sm:$0x1]
    %v201 = vlaneseq
    %v202 = vshrl.u32 %v201, 7
    %v203 = vsub.s32 0, %v202
    %v204 = vrot.slane %v200, %v203
    %205 = vmatprep.subr.mxu0 0.0
    %206 = vmatpush1.msra.mxu0 %v103
    %207 = vmatprep.subr.mxu0 0.0
    %208 = vmatpush1.msra.mxu0 %v102
    %209 = vmatprep.subr.mxu0 0.0
    %210 = vmatpush1.msra.mxu0 %v101
    %211 = vmatprep.subr.mxu0 0.0
    %212 = vmatpush1.msra.mxu0 %v100
    %213 = vmatprep.subr.mxu0 0.0
    %214 = vmatpush1.msra.mxu0 %v99
    %215 = vmatprep.subr.mxu0 0.0
    %216 = vmatpush1.msra.mxu0 %v98
    %217 = vmatprep.subr.mxu0 0.0
    %218 = vmatpush1.msra.mxu0 %v97
    %219 = vmatprep.subr.mxu0 0.0
    %220 = vmatpush1.msra.mxu0 %v96
    %221 = vmatprep.subr.mxu0 0.0
    %222 = vmatpush1.msra.mxu0 %v95
    %223 = vmatprep.subr.mxu0 0.0
    %224 = vmatpush1.msra.mxu0 %v94
    %225 = vmatprep.subr.mxu0 0.0
    %226 = vmatpush1.msra.mxu0 %v93
    %227 = vmatprep.subr.mxu0 0.0
    %228 = vmatpush1.msra.mxu0 %v92
    %229 = vmatprep.subr.mxu0 0.0
    %230 = vmatpush1.msra.mxu0 %v91
    %231 = vmatprep.subr.mxu0 0.0
    %232 = vmatpush1.msra.mxu0 %v90
    %233 = vmatprep.subr.mxu0 0.0
    %234 = vmatpush1.msra.mxu0 %v89
    %235 = vmatprep.subr.mxu0 0.0
    %236 = vmatpush1.msra.mxu0 %v88
    %237 = vmatprep.subr.mxu0 0.0
    %238 = vmatpush2.msra.mxu0 0.0
    %239 = vmatprep.subr.mxu0 0.0
    %240 = vmatpush2.msra.mxu0 0.0
    %241 = vmatprep.subr.mxu0 0.0
    %242 = vmatpush2.msra.mxu0 0.0
    %243 = vmatprep.subr.mxu0 0.0
    %244 = vmatpush2.msra.mxu0 0.0
    %245 = vmatprep.subr.mxu0 0.0
    %246 = vmatpush2.msra.mxu0 0.0
    %247 = vmatprep.subr.mxu0 0.0
    %248 = vmatpush2.msra.mxu0 0.0
    %249 = vmatprep.subr.mxu0 0.0
    %250 = vmatpush2.msra.mxu0 0.0
    %251 = vmatprep.subr.mxu0 0.0
    %252 = vmatpush2.msra.mxu0 0.0
    %253 = vmatprep.subr.mxu0 0.0
    %254 = vmatpush2.msra.mxu0 0.0
    %255 = vmatprep.subr.mxu0 0.0
    %256 = vmatpush2.msra.mxu0 0.0
    %257 = vmatprep.subr.mxu0 0.0
    %258 = vmatpush2.msra.mxu0 0.0
    %259 = vmatprep.subr.mxu0 0.0
    %260 = vmatpush2.msra.mxu0 0.0
    %261 = vmatprep.subr.mxu0 0.0
    %262 = vmatpush2.msra.mxu0 0.0
    %263 = vmatprep.subr.mxu0 0.0
    %264 = vmatpush2.msra.mxu0 0.0
    %265 = vmatprep.subr.mxu0 0.0
    %266 = vmatpush2.msra.mxu0 0.0
    %267 = vmatprep.subr.mxu0 0.0
    %268 = vmatpush2.msra.mxu0 0.0
    %269 = vmatprep.mubr.f32.mxu0 0.0
    %270 = vmatmul.mubr.f32.gmra.mxu0 %v199
    %v271 = vpop.f32.mrf.mxu0
    %v272 = vadd.f32 %v204, %v271
    %v273 = vpop.f32.mrf.mxu0
    %274 = vdwg.mxu0
    %vm275 = vcmp.ge.f32.partialorder %v272, 0.0
    %v276 = vstv %s69
    %v277 = vmul.f32 %v276, %v272
    %v278 = vsel %vm275, %v272, %v277
    %v279 = vld [vmem:[#allocation8 + $0x2] sm:$0x1]
    %v280 = vlaneseq
    %v281 = vshrl.u32 %v280, 7
    %v282 = vsub.s32 0, %v281
    %v283 = vrot.slane %v279, %v282
    %284 = vmatprep.subr.mxu0 0.0
    %285 = vmatpush1.msra.mxu0 %v120
    %286 = vmatprep.subr.mxu0 0.0
    %287 = vmatpush1.msra.mxu0 %v119
    %288 = vmatprep.subr.mxu0 0.0
    %289 = vmatpush1.msra.mxu0 %v118
    %290 = vmatprep.subr.mxu0 0.0
    %291 = vmatpush1.msra.mxu0 %v117
    %292 = vmatprep.subr.mxu0 0.0
    %293 = vmatpush1.msra.mxu0 %v116
    %294 = vmatprep.subr.mxu0 0.0
    %295 = vmatpush1.msra.mxu0 %v115
    %296 = vmatprep.subr.mxu0 0.0
    %297 = vmatpush1.msra.mxu0 %v114
    %298 = vmatprep.subr.mxu0 0.0
    %299 = vmatpush1.msra.mxu0 %v113
    %300 = vmatprep.subr.mxu0 0.0
    %301 = vmatpush1.msra.mxu0 %v112
    %302 = vmatprep.subr.mxu0 0.0
    %303 = vmatpush1.msra.mxu0 %v111
    %304 = vmatprep.subr.mxu0 0.0
    %305 = vmatpush1.msra.mxu0 %v110
    %306 = vmatprep.subr.mxu0 0.0
    %307 = vmatpush1.msra.mxu0 %v109
    %308 = vmatprep.subr.mxu0 0.0
    %309 = vmatpush1.msra.mxu0 %v108
    %310 = vmatprep.subr.mxu0 0.0
    %311 = vmatpush1.msra.mxu0 %v107
    %312 = vmatprep.subr.mxu0 0.0
    %313 = vmatpush1.msra.mxu0 %v106
    %314 = vmatprep.subr.mxu0 0.0
    %315 = vmatpush1.msra.mxu0 %v105
    %316 = vmatprep.subr.mxu0 0.0
    %317 = vmatpush2.msra.mxu0 0.0
    %318 = vmatprep.subr.mxu0 0.0
    %319 = vmatpush2.msra.mxu0 0.0
    %320 = vmatprep.subr.mxu0 0.0
    %321 = vmatpush2.msra.mxu0 0.0
    %322 = vmatprep.subr.mxu0 0.0
    %323 = vmatpush2.msra.mxu0 0.0
    %324 = vmatprep.subr.mxu0 0.0
    %325 = vmatpush2.msra.mxu0 0.0
    %326 = vmatprep.subr.mxu0 0.0
    %327 = vmatpush2.msra.mxu0 0.0
    %328 = vmatprep.subr.mxu0 0.0
    %329 = vmatpush2.msra.mxu0 0.0
    %330 = vmatprep.subr.mxu0 0.0
    %331 = vmatpush2.msra.mxu0 0.0
    %332 = vmatprep.subr.mxu0 0.0
    %333 = vmatpush2.msra.mxu0 0.0
    %334 = vmatprep.subr.mxu0 0.0
    %335 = vmatpush2.msra.mxu0 0.0
    %336 = vmatprep.subr.mxu0 0.0
    %337 = vmatpush2.msra.mxu0 0.0
    %338 = vmatprep.subr.mxu0 0.0
    %339 = vmatpush2.msra.mxu0 0.0
    %340 = vmatprep.subr.mxu0 0.0
    %341 = vmatpush2.msra.mxu0 0.0
    %342 = vmatprep.subr.mxu0 0.0
    %343 = vmatpush2.msra.mxu0 0.0
    %344 = vmatprep.subr.mxu0 0.0
    %345 = vmatpush2.msra.mxu0 0.0
    %346 = vmatprep.subr.mxu0 0.0
    %347 = vmatpush2.msra.mxu0 0.0
    %348 = vmatprep.mubr.f32.mxu0 0.0
    %349 = vmatmul.mubr.f32.gmra.mxu0 %v278
    %v350 = vpop.f32.mrf.mxu0
    %v351 = vadd.f32 %v283, %v350
    %v352 = vpop.f32.mrf.mxu0
    %353 = vdwg.mxu0
    %354 = vst [vmem:[#allocation10] sm:$0xff] %v351
    // Predicated region
    $region34: #{tpu_custom_call.1} parent=1 // pred_check
      _
    $region35: #{tpu_custom_call.1} parent=1 // pred_check_branch
      %356 = sbr.rel (0) target = $region37
    $region36: #{tpu_custom_call.1} parent=1 // pred_region
      %s358 = ssub.s32 128, 128
      %359 = vsyncadd [#allocation4], %s358
      %s361 = sshll.u32 [#allocation10], 4
      %s362 = int_to_ptr.vmem [resolvable:$true] %s361
      %364 = dma.vmem_to_hbm [thread:$0]  %s362, 128, %s4, [#allocation4]
    $region37: #{tpu_custom_call.1} parent=1 // pred_fallthru
      _
    // Predicated region
    $region38: #{tpu_custom_call.1} parent=1 // pred_check
      _
    $region39: #{tpu_custom_call.1} parent=1 // pred_check_branch
      %366 = sbr.rel (0) target = $region41
    $region40: #{tpu_custom_call.1} parent=1 // pred_region
      %367 = dma.done [#allocation4], 128
    $region41: #{tpu_custom_call.1} parent=1 // pred_fallthru
      _
    %368 = vsyncpa [#allocation3], 1
    %369 = vsyncpa [#allocation7], 1
    %370 = vsyncpa [#allocation4], 1
    %371 = vsyncpa [#allocation5], 1

</llo_original>
